<compile_context>
chip_gen: v7x
topology: tpu7x:2x2x1
jax: 0.10.0
libtpu: 0.0.40
codegen_flags: <defaults>
</compile_context>

<pallas_src>
import functools

import jax
import jax.numpy as jnp
from jax.experimental import pallas as pl
from jax.experimental.pallas import tpu as pltpu


def _ceil_to(a, m):
    return -(-a // m) * m


# ---------------------------------------------------------------------------
# Kernels
# ---------------------------------------------------------------------------

def _fc_scale(pooled, w1t_ref, b1_ref, w2t_ref, b2_ref, alpha_ref):
    """fc = Linear -> PReLU(shared alpha) -> Linear -> Sigmoid, on (Bt, C) f32."""
    h = jnp.dot(pooled, w1t_ref[...], preferred_element_type=jnp.float32) + b1_ref[...]
    alpha = alpha_ref[0, 0]
    h = jnp.where(h >= 0.0, h, alpha * h)
    y = jnp.dot(h, w2t_ref[...], preferred_element_type=jnp.float32) + b2_ref[...]
    return jax.nn.sigmoid(y)                                      # (Bt, C) f32


def se_fused_kernel(x_ref, w1t_ref, b1_ref, w2t_ref, b2_ref, alpha_ref, o_ref,
                    *, inv_hw, channels_last):
    """Whole (Bt, C, HW) / (Bt, HW, C) slab per grid step: pool + fc + rescale."""
    x = x_ref[...]
    reduce_axis = 1 if channels_last else 2
    # Only the (Bt, C) pooled result lives in f32; the slab stays in its dtype.
    pooled = jnp.sum(x, axis=reduce_axis, dtype=jnp.float32) * inv_hw
    y = _fc_scale(pooled, w1t_ref, b1_ref, w2t_ref, b2_ref, alpha_ref)
    scale = (y[:, None, :] if channels_last else y[:, :, None]).astype(x.dtype)
    o_ref[...] = (x * scale).astype(o_ref.dtype)


def se_pool_kernel(x_ref, pooled_ref, *, inv_hw, channels_last, hw_total, hw_chunk):
    """HW-tiled global average pool; accumulates into the resident (Bt,1,C) output."""
    hw_i = pl.program_id(1)

    @pl.when(hw_i == 0)
    def _():
        pooled_ref[...] = jnp.zeros_like(pooled_ref)

    x = x_ref[...]
    hw_axis = 1 if channels_last else 2
    if hw_total % hw_chunk != 0:
        # Ragged last hw chunk: zero the padded tail so it can't contaminate the sum.
        pos = hw_i * hw_chunk + jax.lax.broadcasted_iota(jnp.int32, x.shape, hw_axis)
        x = jnp.where(pos < hw_total, x, jnp.zeros_like(x))
    pooled_ref[...] += jnp.sum(x, axis=hw_axis, dtype=jnp.float32)[:, None, :]

    @pl.when(hw_i == pl.num_programs(1) - 1)
    def _():
        pooled_ref[...] *= inv_hw


def se_rescale_kernel(pooled_ref, w1t_ref, b1_ref, w2t_ref, b2_ref, alpha_ref,
                      x_ref, o_ref, *, channels_last):
    """HW-tiled rescale; the tiny fc is recomputed per chunk (latency-only)."""
    pooled = pooled_ref[...][:, 0, :]                             # (Bt, C) f32
    y = _fc_scale(pooled, w1t_ref, b1_ref, w2t_ref, b2_ref, alpha_ref)
    x = x_ref[...]
    scale = (y[:, None, :] if channels_last else y[:, :, None]).astype(x.dtype)
    o_ref[...] = (x * scale).astype(o_ref.dtype)


# ---------------------------------------------------------------------------
# Wrapper
# ---------------------------------------------------------------------------

def _pick_bt(batch, per_sample_bytes, block_budget_bytes):
    """Batch rows per block from a byte budget (no per-TC halving: v5e/v6e are 1 TC)."""
    per_sample_bytes = max(int(per_sample_bytes), 1)
    bt = max(1, min(block_budget_bytes // per_sample_bytes, batch))
    if bt >= 8:
        bt -= bt % 8                       # sublane-friendly batch chunks
    # Soft preference: even grid length keeps v7x's two TensorCores balanced.
    grid = -(-batch // bt)
    if grid > 1 and grid % 2 == 1:
        bt_even = -(-batch // (grid + 1))
        if bt_even >= 1 and 2 * bt_even >= bt and (-(-batch // bt_even)) % 2 == 0:
            bt = bt_even
    return int(bt)


def _vmem_limit_bytes(need_bytes):
    # need + headroom for Mosaic-internal scratch; floor at the known-good
    # 32 MiB, cap at 56 MiB (below v7x's 64 MiB physical VMEM, fine on v5e/v6e).
    return int(min(max(need_bytes * 5 // 4 + (2 << 20), 32 << 20), 56 << 20))


def se_block(x, w1, b1, w2, b2, alpha, *,
             target_block_bytes=2 << 20,   # ~2 MiB blocks: good on v5e/v6e/v7x
             max_block_bytes=8 << 20,      # 4x this (double-buffered in+out) < 48 MiB
             channels_last=None):
    """x: (B, C, H, W); w1: (hidden, C); b1: (hidden,); w2: (C, hidden); b2: (C,)."""
    B, C, H, W = x.shape
    HW = H * W
    hidden = w1.shape[0]
    itemsize = x.dtype.itemsize
    if channels_last is None:
        # Lane density on the store path is the biggest single lever: put C on
        # the lane axis when HW would pad lanes but C would not.
        channels_last = (HW % 128 != 0) and (C % 128 == 0)

    if channels_last:
        x_r = jnp.transpose(x.reshape(B, C, HW), (0, 2, 1))       # (B, HW, C)
        per_sample_bytes = _ceil_to(HW, 8) * _ceil_to(C, 128) * itemsize
    else:
        x_r = x.reshape(B, C, HW)                                 # (B, C, HW)
        per_sample_bytes = _ceil_to(C, 8) * _ceil_to(HW, 128) * itemsize

    w1t = w1.T                                                    # (C, hidden)
    w2t = w2.T                                                    # (hidden, C)
    b1_2d = b1.reshape(1, hidden)
    b2_2d = b2.reshape(1, C)
    alpha_2d = jnp.asarray(alpha, jnp.float32).reshape(1, 1)
    inv_hw = 1.0 / HW

    def _p2(r, c, isz=4):
        return _ceil_to(r, 8) * _ceil_to(c, 128) * isz

    weight_bytes = 2 * (_p2(C, hidden) + _p2(hidden, C) + _p2(1, hidden) + _p2(1, C))

    weight_specs = [
        pl.BlockSpec((C, hidden), lambda *_: (0, 0)),
        pl.BlockSpec((1, hidden), lambda *_: (0, 0)),
        pl.BlockSpec((hidden, C), lambda *_: (0, 0)),
        pl.BlockSpec((1, C), lambda *_: (0, 0)),
        pl.BlockSpec(memory_space=pltpu.SMEM),                    # shared PReLU alpha
    ]

    min_chunk = 8 if channels_last else 128
    # TODO(synk): samples with huge C but HW <= min_chunk would need channel
    # tiling of the fc path; not handled (does not occur for SEBlock shapes).
    fused_ok = per_sample_bytes <= max_block_bytes or HW <= min_chunk

    if fused_ok:
        # ---------------- fused single-pass path ----------------
        bt = _pick_bt(B, per_sample_bytes, min(target_block_bytes, max_block_bytes))
        grid = (pl.cdiv(B, bt),)
        block = (bt, HW, C) if channels_last else (bt, C, HW)
        block_bytes = bt * per_sample_bytes
        out_r = pl.pallas_call(
            functools.partial(se_fused_kernel, inv_hw=inv_hw,
                              channels_last=channels_last),
            out_shape=jax.ShapeDtypeStruct(x_r.shape, x.dtype),
            grid=grid,
            in_specs=[pl.BlockSpec(block, lambda b: (b, 0, 0))] + weight_specs,
            out_specs=pl.BlockSpec(block, lambda b: (b, 0, 0)),
            compiler_params=pltpu.CompilerParams(
                dimension_semantics=("parallel",),
                vmem_limit_bytes=_vmem_limit_bytes(4 * block_bytes + weight_bytes),
            ),
        )(x_r, w1t, b1_2d, w2t, b2_2d, alpha_2d)
    else:
        # ------------- large-sample fallback: tile the HW axis -------------
        bt = 1
        if channels_last:
            row_bytes = _ceil_to(C, 128) * itemsize
            hw_chunk = max(min_chunk, (target_block_bytes // row_bytes) // 8 * 8)
        else:
            row_bytes = _ceil_to(C, 8) * itemsize
            hw_chunk = max(min_chunk, (target_block_bytes // row_bytes) // 128 * 128)
        hw_chunk = int(min(hw_chunk, _ceil_to(HW, min_chunk)))
        n_hw = pl.cdiv(HW, hw_chunk)
        grid = (B, n_hw)                                          # hw (reduction) axis last
        if channels_last:
            x_block, x_index = (bt, hw_chunk, C), (lambda b, h: (b, h, 0))
        else:
            x_block, x_index = (bt, C, hw_chunk), (lambda b, h: (b, 0, h))
        chunk_bytes = hw_chunk * row_bytes
        pooled_bytes = 2 * bt * _p2(1, C)

        pooled = pl.pallas_call(
            functools.partial(se_pool_kernel, inv_hw=inv_hw,
                              channels_last=channels_last,
                              hw_total=HW, hw_chunk=hw_chunk),
            out_shape=jax.ShapeDtypeStruct((B, 1, C), jnp.float32),
            grid=grid,
            in_specs=[pl.BlockSpec(x_block, x_index)],
            out_specs=pl.BlockSpec((bt, 1, C), lambda b, h: (b, 0, 0)),
            compiler_params=pltpu.CompilerParams(
                dimension_semantics=("parallel", "arbitrary"),
                vmem_limit_bytes=_vmem_limit_bytes(2 * chunk_bytes + pooled_bytes),
            ),
        )(x_r)

        out_r = pl.pallas_call(
            functools.partial(se_rescale_kernel, channels_last=channels_last),
            out_shape=jax.ShapeDtypeStruct(x_r.shape, x.dtype),
            grid=grid,
            in_specs=[pl.BlockSpec((bt, 1, C), lambda b, h: (b, 0, 0))]
                     + weight_specs
                     + [pl.BlockSpec(x_block, x_index)],
            out_specs=pl.BlockSpec(x_block, x_index),
            compiler_params=pltpu.CompilerParams(
                dimension_semantics=("parallel", "arbitrary"),
                vmem_limit_bytes=_vmem_limit_bytes(
                    4 * chunk_bytes + weight_bytes + pooled_bytes),
            ),
        )(pooled, w1t, b1_2d, w2t, b2_2d, alpha_2d, x_r)

    out = jnp.transpose(out_r, (0, 2, 1)) if channels_last else out_r
    return out.reshape(B, C, H, W)


def se_block_ref(x, w1, b1, w2, b2, alpha):
    """Pure-JAX reference of the PyTorch forward pass (f32-precision matmuls)."""
    b, c, _, _ = x.shape
    hp = jax.lax.Precision.HIGHEST
    y = jnp.mean(x, axis=(2, 3))                      # avg_pool(1).view(b, c)
    h = jnp.dot(y, w1.T, precision=hp) + b1           # Linear(c, c//r)
    h = jnp.where(h >= 0, h, alpha * h)               # PReLU (shared alpha)
    z = jnp.dot(h, w2.T, precision=hp) + b2           # Linear(c//r, c)
    z = jax.nn.sigmoid(z)                             # Sigmoid
    return x * z.reshape(b, c, 1, 1)


if __name__ == "__main__":

    def make_case(key, B, C, H, W, reduction=16):
        hidden = C // reduction
        ks = jax.random.split(key, 5)
        x = jax.random.normal(ks[0], (B, C, H, W), dtype=jnp.float32)
        w1 = jax.random.normal(ks[1], (hidden, C), dtype=jnp.float32) * (1.0 / jnp.sqrt(C))
        b1 = jax.random.normal(ks[2], (hidden,), dtype=jnp.float32) * 0.1
        w2 = jax.random.normal(ks[3], (C, hidden), dtype=jnp.float32) * (1.0 / jnp.sqrt(hidden))
        b2 = jax.random.normal(ks[4], (C,), dtype=jnp.float32) * 0.1
        alpha = jnp.float32(0.25)    # nn.PReLU() default init
        return x, w1, b1, w2, b2, alpha

    def check(args, **kw):
        out = jax.block_until_ready(se_block(*args, **kw))
        ref = se_block_ref(*args)
        assert out.shape == args[0].shape and out.dtype == args[0].dtype
        # Tolerance accounts for possible bf16 MXU passes in the in-kernel dots.
        assert jnp.allclose(out, ref, atol=2e-3, rtol=2e-3), \
            float(jnp.max(jnp.abs(out - ref)))

    keys = jax.random.split(jax.random.PRNGKey(0), 4)

    # 1) Primary: fused single-pass path, lane-dense HW on the last axis.
    check(make_case(keys[0], 4, 64, 16, 16))

    # 2) cdiv grid with a ragged last batch block (B=3, Bt=2).
    check(make_case(keys[1], 3, 64, 16, 16), target_block_bytes=2 * 64 * 256 * 4)

    # 3) Channels-last fused path (HW=49 lane-padded, C=128 lane-dense).
    check(make_case(keys[2], 2, 128, 7, 7))

    # 4) HW-tiled pool + rescale fallback with a ragged hw chunk (forced budget).
    check(make_case(keys[3], 2, 64, 12, 12),
          target_block_bytes=16 * 1024, max_block_bytes=16 * 1024)

    print("KERNEL_OK")
</pallas_src>

<mosaic_0001>
module attributes {stable_mosaic.version = 11 : i64} {
  func.func @se_fused_kernel(%arg0: i32, %arg1: memref<4x64x256xf32, #tpu.memory_space<vmem>>, %arg2: memref<64x4xf32, #tpu.memory_space<vmem>>, %arg3: memref<1x4xf32, #tpu.memory_space<vmem>>, %arg4: memref<4x64xf32, #tpu.memory_space<vmem>>, %arg5: memref<1x64xf32, #tpu.memory_space<vmem>>, %arg6: memref<1x1xf32, #tpu.memory_space<smem>>, %arg7: memref<4x64x256xf32, #tpu.memory_space<vmem>>) attributes {dimension_semantics = [#tpu.dimension_semantics<parallel>], iteration_bounds = array<i64: 1>, scalar_prefetch = 0 : i64, scratch_operands = 0 : i64, tpu.core_type = #tpu.core_type<tc>, window_params = [{transform_indices = @transform_0, window_bounds = array<i64: 4, 64, 256>}, {pipeline_mode = #tpu.pipeline_mode<synchronous>, transform_indices = @transform_1, window_bounds = array<i64: 64, 4>}, {pipeline_mode = #tpu.pipeline_mode<synchronous>, transform_indices = @transform_2, window_bounds = array<i64: 1, 4>}, {pipeline_mode = #tpu.pipeline_mode<synchronous>, transform_indices = @transform_3, window_bounds = array<i64: 4, 64>}, {pipeline_mode = #tpu.pipeline_mode<synchronous>, transform_indices = @transform_4, window_bounds = array<i64: 1, 64>}, {transform_indices = @transform_5, window_bounds = array<i64: 1, 1>}, {transform_indices = @transform_6, window_bounds = array<i64: 4, 64, 256>}]} {
    %c0 = arith.constant 0 : index
    %c0_0 = arith.constant 0 : index
    %c0_1 = arith.constant 0 : index
    %0 = vector.load %arg1[%c0, %c0_0, %c0_1] : memref<4x64x256xf32, #tpu.memory_space<vmem>>, vector<4x64x256xf32>
    %cst = arith.constant dense<0.000000e+00> : vector<4x64xf32>
    %1 = vector.multi_reduction <add>, %0, %cst [2] : vector<4x64x256xf32> to vector<4x64xf32>
    %cst_2 = arith.constant 3.906250e-03 : f32
    %2 = vector.broadcast %cst_2 : f32 to vector<4x64xf32>
    %3 = arith.mulf %1, %2 : vector<4x64xf32>
    %c0_3 = arith.constant 0 : index
    %c0_4 = arith.constant 0 : index
    %4 = vector.load %arg2[%c0_3, %c0_4] : memref<64x4xf32, #tpu.memory_space<vmem>>, vector<64x4xf32>
    %cst_5 = arith.constant dense<0.000000e+00> : vector<4x4xf32>
    %5 = tpu.matmul %3, %4, %cst_5 {dimension_numbers = #tpu.dot_dimension_numbers<[1], [0], [0], [1], [0, 0, 1, 1], [], []>} : vector<4x64xf32>, vector<64x4xf32>, vector<4x4xf32> -> vector<4x4xf32>
    %c0_6 = arith.constant 0 : index
    %c0_7 = arith.constant 0 : index
    %6 = vector.load %arg3[%c0_6, %c0_7] : memref<1x4xf32, #tpu.memory_space<vmem>>, vector<1x4xf32>
    %7 = vector.broadcast %6 : vector<1x4xf32> to vector<4x4xf32>
    %8 = arith.addf %5, %7 : vector<4x4xf32>
    %c0_8 = arith.constant 0 : index
    %c0_9 = arith.constant 0 : index
    %9 = memref.load %arg6[%c0_8, %c0_9] : memref<1x1xf32, #tpu.memory_space<smem>>
    %cst_10 = arith.constant 0.000000e+00 : f32
    %10 = vector.broadcast %cst_10 : f32 to vector<4x4xf32>
    %11 = arith.cmpf oge, %8, %10 : vector<4x4xf32>
    %12 = vector.broadcast %9 : f32 to vector<4x4xf32>
    %13 = arith.mulf %12, %8 : vector<4x4xf32>
    %14 = arith.select %11, %8, %13 : vector<4x4xi1>, vector<4x4xf32>
    %c0_11 = arith.constant 0 : index
    %c0_12 = arith.constant 0 : index
    %15 = vector.load %arg4[%c0_11, %c0_12] : memref<4x64xf32, #tpu.memory_space<vmem>>, vector<4x64xf32>
    %cst_13 = arith.constant dense<0.000000e+00> : vector<4x64xf32>
    %16 = tpu.matmul %14, %15, %cst_13 {dimension_numbers = #tpu.dot_dimension_numbers<[1], [0], [0], [1], [0, 0, 1, 1], [], []>} : vector<4x4xf32>, vector<4x64xf32>, vector<4x64xf32> -> vector<4x64xf32>
    %c0_14 = arith.constant 0 : index
    %c0_15 = arith.constant 0 : index
    %17 = vector.load %arg5[%c0_14, %c0_15] : memref<1x64xf32, #tpu.memory_space<vmem>>, vector<1x64xf32>
    %18 = vector.broadcast %17 : vector<1x64xf32> to vector<4x64xf32>
    %19 = arith.addf %16, %18 : vector<4x64xf32>
    %20 = arith.negf %19 : vector<4x64xf32>
    %21 = math.exp %20 : vector<4x64xf32>
    %cst_16 = arith.constant 1.000000e+00 : f32
    %22 = vector.broadcast %cst_16 : f32 to vector<4x64xf32>
    %23 = arith.addf %22, %21 : vector<4x64xf32>
    %24 = arith.divf %22, %23 : vector<4x64xf32>
    %25 = vector.shape_cast %24 : vector<4x64xf32> to vector<4x64x1xf32>
    %26 = vector.broadcast %25 : vector<4x64x1xf32> to vector<4x64x256xf32>
    %27 = arith.mulf %0, %26 : vector<4x64x256xf32>
    %c0_17 = arith.constant 0 : index
    %c0_18 = arith.constant 0 : index
    %c0_19 = arith.constant 0 : index
    %28 = vector.load %arg7[%c0_17, %c0_18, %c0_19] : memref<4x64x256xf32, #tpu.memory_space<vmem>>, vector<4x64x256xf32>
    tpu.vector_store %arg7[%c0_17, %c0_18, %c0_19], %27 {strides = array<i32>} : memref<4x64x256xf32, #tpu.memory_space<vmem>>, vector<4x64x256xf32>,
    return
  }
  func.func @transform_0(%arg0: i32) -> (i32, i32, i32) {
    %c0_i32 = arith.constant 0 : i32
    %c0_i32_0 = arith.constant 0 : i32
    %c0_i32_1 = arith.constant 0 : i32
    return %arg0, %c0_i32, %c0_i32_0 : i32, i32, i32
  }
  func.func @transform_1(%arg0: i32) -> (i32, i32) {
    %c0_i32 = arith.constant 0 : i32
    %c0_i32_0 = arith.constant 0 : i32
    %c0_i32_1 = arith.constant 0 : i32
    return %c0_i32, %c0_i32_0 : i32, i32
  }
  func.func @transform_2(%arg0: i32) -> (i32, i32) {
    %c0_i32 = arith.constant 0 : i32
    %c0_i32_0 = arith.constant 0 : i32
    %c0_i32_1 = arith.constant 0 : i32
    return %c0_i32, %c0_i32_0 : i32, i32
  }
  func.func @transform_3(%arg0: i32) -> (i32, i32) {
    %c0_i32 = arith.constant 0 : i32
    %c0_i32_0 = arith.constant 0 : i32
    %c0_i32_1 = arith.constant 0 : i32
    return %c0_i32, %c0_i32_0 : i32, i32
  }
  func.func @transform_4(%arg0: i32) -> (i32, i32) {
    %c0_i32 = arith.constant 0 : i32
    %c0_i32_0 = arith.constant 0 : i32
    %c0_i32_1 = arith.constant 0 : i32
    return %c0_i32, %c0_i32_0 : i32, i32
  }
  func.func @transform_5(%arg0: i32) -> (i32, i32) {
    %c0_i32 = arith.constant 0 : i32
    %c0_i32_0 = arith.constant 0 : i32
    %c0_i32_1 = arith.constant 0 : i32
    return %c0_i32, %c0_i32_0 : i32, i32
  }
  func.func @transform_6(%arg0: i32) -> (i32, i32, i32) {
    %c0_i32 = arith.constant 0 : i32
    %c0_i32_0 = arith.constant 0 : i32
    %c0_i32_1 = arith.constant 0 : i32
    return %arg0, %c0_i32, %c0_i32_0 : i32, i32, i32
  }
}

</mosaic_0001>

<llo_original>
// kernel: tpu_custom_call.1
$region0: #{tpu_custom_call.1}
  #allocation0 [shape = 'u32[]', space=smem, size = 0x4, offset = 0x4, fixed_abs, tag = 'smem constant byte address 0x4 - core index']
  #allocation1 [shape = 'u32[144,128]{1,0:T(1,128)}', space=vmem, size = 0x12000, scoped, tag = 'internal scratch']
  #allocation2 [shape = 'f32[1,1]{1,0:T(1,128)S(6)}', space=smem, size = 0x200, scoped, tag = 'scoped memory for tpu_custom_call.1']
  %s0 = inlined_call_operand.hbm [shape: f32[4,64,256], index: 0, kind: input, shape index: {}]
  %s1 = inlined_call_operand.vmem [shape: f32[64,4], index: 1, kind: input, shape index: {}]
  %s2 = inlined_call_operand.vmem [shape: f32[1,4], index: 2, kind: input, shape index: {}]
  %s3 = inlined_call_operand.vmem [shape: f32[4,64], index: 3, kind: input, shape index: {}]
  %s4 = inlined_call_operand.vmem [shape: f32[1,64], index: 4, kind: input, shape index: {}]
  %s5 = inlined_call_operand.<no memory space> [shape: f32[1,1], index: 5, kind: input, shape index: {}]
  %s6 = inlined_call_operand.hbm [shape: f32[4,64,256], index: 6, kind: output, shape index: {}]
  %s7 = sld [smem:[#allocation0]]
  $region38: #{tpu_custom_call.1} parent=0
    _
  %s9 = ssub.s32 1, %s7
  %s10 = scalar_select 0, %s9, %s7
  %11 = sst [smem:[#allocation2]] %s5
  $region1: #{tpu_custom_call.1} parent=0
    #allocation3 [shape = 'u8[262144]{0}', space=vmem, size = 0x40000, scoped, tag = 'input window, operand 0, single buffered']
    #allocation4 [shape = 's32[1]{0}', space=sflag, size = 0x4, scoped, tag = 'scoped memory for tpu_custom_call.1']
    #allocation5 [shape = 's32[1]{0}', space=sflag, size = 0x4, scoped, tag = 'scoped memory for tpu_custom_call.1']
    #allocation6 [shape = 'u8[262144]{0}', space=vmem, size = 0x40000, scoped, tag = 'output window, operand 0, single buffered']
    %12 = vsyncpa [#allocation4], 0
    %13 = vsyncpa [#allocation5], 0
    // Predicated region
    $region2: #{tpu_custom_call.1} parent=1 // pred_check
      _
    $region3: #{tpu_custom_call.1} parent=1 // pred_check_branch
      %15 = sbr.rel (0) target = $region5
    $region4: #{tpu_custom_call.1} parent=1 // pred_region
      %s17 = ssub.s32 8192, 8192
      %18 = vsyncadd [#allocation4], %s17
      %s19 = sshll.u32 [#allocation3], 4
      %s20 = int_to_ptr.vmem [resolvable:$true] %s19
      %25 = dma.hbm_to_vmem [thread:$0]  %s0, 8192, %s20, [#allocation4], 256, 256, 16
    $region5: #{tpu_custom_call.1} parent=1 // pred_fallthru
      _
    // Predicated region
    $region6: #{tpu_custom_call.1} parent=1 // pred_check
      _
    $region7: #{tpu_custom_call.1} parent=1 // pred_check_branch
      %27 = sbr.rel (0) target = $region9
    $region8: #{tpu_custom_call.1} parent=1 // pred_region
      _
    $region9: #{tpu_custom_call.1} parent=1 // pred_fallthru
      _
    // Predicated region
    $region10: #{tpu_custom_call.1} parent=1 // pred_check
      _
    $region11: #{tpu_custom_call.1} parent=1 // pred_check_branch
      %29 = sbr.rel (0) target = $region13
    $region12: #{tpu_custom_call.1} parent=1 // pred_region
      _
    $region13: #{tpu_custom_call.1} parent=1 // pred_fallthru
      _
    // Predicated region
    $region14: #{tpu_custom_call.1} parent=1 // pred_check
      _
    $region15: #{tpu_custom_call.1} parent=1 // pred_check_branch
      %31 = sbr.rel (0) target = $region17
    $region16: #{tpu_custom_call.1} parent=1 // pred_region
      _
    $region17: #{tpu_custom_call.1} parent=1 // pred_fallthru
      _
    // Predicated region
    $region18: #{tpu_custom_call.1} parent=1 // pred_check
      _
    $region19: #{tpu_custom_call.1} parent=1 // pred_check_branch
      %33 = sbr.rel (0) target = $region21
    $region20: #{tpu_custom_call.1} parent=1 // pred_region
      _
    $region21: #{tpu_custom_call.1} parent=1 // pred_fallthru
      _
    // Predicated region
    $region22: #{tpu_custom_call.1} parent=1 // pred_check
      _
    $region23: #{tpu_custom_call.1} parent=1 // pred_check_branch
      %35 = sbr.rel (0) target = $region25
    $region24: #{tpu_custom_call.1} parent=1 // pred_region
      _
    $region25: #{tpu_custom_call.1} parent=1 // pred_fallthru
      _
    // Predicated region
    $region26: #{tpu_custom_call.1} parent=1 // pred_check
      _
    $region27: #{tpu_custom_call.1} parent=1 // pred_check_branch
      %37 = sbr.rel (0) target = $region29
    $region28: #{tpu_custom_call.1} parent=1 // pred_region
      %38 = dma.done [#allocation4], 8192
    $region29: #{tpu_custom_call.1} parent=1 // pred_fallthru
      _
    %v39 = vld [vmem:[#allocation3] sm:$0xff]
    %v40 = vld [vmem:[#allocation3 + $0x8] sm:$0xff]
    %v41 = vld [vmem:[#allocation3 + $0x10] sm:$0xff]
    %v42 = vld [vmem:[#allocation3 + $0x18] sm:$0xff]
    %v43 = vld [vmem:[#allocation3 + $0x20] sm:$0xff]
    %v44 = vld [vmem:[#allocation3 + $0x28] sm:$0xff]
    %v45 = vld [vmem:[#allocation3 + $0x30] sm:$0xff]
    %v46 = vld [vmem:[#allocation3 + $0x38] sm:$0xff]
    %v47 = vld [vmem:[#allocation3 + $0x40] sm:$0xff]
    %v48 = vld [vmem:[#allocation3 + $0x48] sm:$0xff]
    %v49 = vld [vmem:[#allocation3 + $0x50] sm:$0xff]
    %v50 = vld [vmem:[#allocation3 + $0x58] sm:$0xff]
    %v51 = vld [vmem:[#allocation3 + $0x60] sm:$0xff]
    %v52 = vld [vmem:[#allocation3 + $0x68] sm:$0xff]
    %v53 = vld [vmem:[#allocation3 + $0x70] sm:$0xff]
    %v54 = vld [vmem:[#allocation3 + $0x78] sm:$0xff]
    %v55 = vld [vmem:[#allocation3 + $0x80] sm:$0xff]
    %v56 = vld [vmem:[#allocation3 + $0x88] sm:$0xff]
    %v57 = vld [vmem:[#allocation3 + $0x90] sm:$0xff]
    %v58 = vld [vmem:[#allocation3 + $0x98] sm:$0xff]
    %v59 = vld [vmem:[#allocation3 + $0xa0] sm:$0xff]
    %v60 = vld [vmem:[#allocation3 + $0xa8] sm:$0xff]
    %v61 = vld [vmem:[#allocation3 + $0xb0] sm:$0xff]
    %v62 = vld [vmem:[#allocation3 + $0xb8] sm:$0xff]
    %v63 = vld [vmem:[#allocation3 + $0xc0] sm:$0xff]
    %v64 = vld [vmem:[#allocation3 + $0xc8] sm:$0xff]
    %v65 = vld [vmem:[#allocation3 + $0xd0] sm:$0xff]
    %v66 = vld [vmem:[#allocation3 + $0xd8] sm:$0xff]
    %v67 = vld [vmem:[#allocation3 + $0xe0] sm:$0xff]
    %v68 = vld [vmem:[#allocation3 + $0xe8] sm:$0xff]
    %v69 = vld [vmem:[#allocation3 + $0xf0] sm:$0xff]
    %v70 = vld [vmem:[#allocation3 + $0xf8] sm:$0xff]
    %v71 = vld [vmem:[#allocation3 + $0x100] sm:$0xff]
    %v72 = vld [vmem:[#allocation3 + $0x108] sm:$0xff]
    %v73 = vld [vmem:[#allocation3 + $0x110] sm:$0xff]
    %v74 = vld [vmem:[#allocation3 + $0x118] sm:$0xff]
    %v75 = vld [vmem:[#allocation3 + $0x120] sm:$0xff]
    %v76 = vld [vmem:[#allocation3 + $0x128] sm:$0xff]
    %v77 = vld [vmem:[#allocation3 + $0x130] sm:$0xff]
    %v78 = vld [vmem:[#allocation3 + $0x138] sm:$0xff]
    %v79 = vld [vmem:[#allocation3 + $0x140] sm:$0xff]
    %v80 = vld [vmem:[#allocation3 + $0x148] sm:$0xff]
    %v81 = vld [vmem:[#allocation3 + $0x150] sm:$0xff]
    %v82 = vld [vmem:[#allocation3 + $0x158] sm:$0xff]
    %v83 = vld [vmem:[#allocation3 + $0x160] sm:$0xff]
    %v84 = vld [vmem:[#allocation3 + $0x168] sm:$0xff]
    %v85 = vld [vmem:[#allocation3 + $0x170] sm:$0xff]
    %v86 = vld [vmem:[#allocation3 + $0x178] sm:$0xff]
    %v87 = vld [vmem:[#allocation3 + $0x180] sm:$0xff]
    %v88 = vld [vmem:[#allocation3 + $0x188] sm:$0xff]
    %v89 = vld [vmem:[#allocation3 + $0x190] sm:$0xff]
    %v90 = vld [vmem:[#allocation3 + $0x198] sm:$0xff]
    %v91 = vld [vmem:[#allocation3 + $0x1a0] sm:$0xff]
    %v92 = vld [vmem:[#allocation3 + $0x1a8] sm:$0xff]
    %v93 = vld [vmem:[#allocation3 + $0x1b0] sm:$0xff]
    %v94 = vld [vmem:[#allocation3 + $0x1b8] sm:$0xff]
    %v95 = vld [vmem:[#allocation3 + $0x1c0] sm:$0xff]
    %v96 = vld [vmem:[#allocation3 + $0x1c8] sm:$0xff]
    %v97 = vld [vmem:[#allocation3 + $0x1d0] sm:$0xff]
    %v98 = vld [vmem:[#allocation3 + $0x1d8] sm:$0xff]
    %v99 = vld [vmem:[#allocation3 + $0x1e0] sm:$0xff]
    %v100 = vld [vmem:[#allocation3 + $0x1e8] sm:$0xff]
    %v101 = vld [vmem:[#allocation3 + $0x1f0] sm:$0xff]
    %v102 = vld [vmem:[#allocation3 + $0x1f8] sm:$0xff]
    %v103 = vadd.f32 %v39, %v40
    %104 = vadd.xlane.f32.xlu0 %v103
    %v105 = vpop.xlane.xlu0 %104
    %v106 = vadd.f32 %v41, %v42
    %107 = vadd.xlane.f32.xlu0 %v106
    %v108 = vpop.xlane.xlu0 %107
    %v109 = vadd.f32 %v43, %v44
    %110 = vadd.xlane.f32.xlu0 %v109
    %v111 = vpop.xlane.xlu0 %110
    %v112 = vadd.f32 %v45, %v46
    %113 = vadd.xlane.f32.xlu0 %v112
    %v114 = vpop.xlane.xlu0 %113
    %v115 = vadd.f32 %v47, %v48
    %116 = vadd.xlane.f32.xlu0 %v115
    %v117 = vpop.xlane.xlu0 %116
    %v118 = vadd.f32 %v49, %v50
    %119 = vadd.xlane.f32.xlu0 %v118
    %v120 = vpop.xlane.xlu0 %119
    %v121 = vadd.f32 %v51, %v52
    %122 = vadd.xlane.f32.xlu0 %v121
    %v123 = vpop.xlane.xlu0 %122
    %v124 = vadd.f32 %v53, %v54
    %125 = vadd.xlane.f32.xlu0 %v124
    %v126 = vpop.xlane.xlu0 %125
    %v127 = vadd.f32 %v55, %v56
    %128 = vadd.xlane.f32.xlu0 %v127
    %v129 = vpop.xlane.xlu0 %128
    %v130 = vadd.f32 %v57, %v58
    %131 = vadd.xlane.f32.xlu0 %v130
    %v132 = vpop.xlane.xlu0 %131
    %v133 = vadd.f32 %v59, %v60
    %134 = vadd.xlane.f32.xlu0 %v133
    %v135 = vpop.xlane.xlu0 %134
    %v136 = vadd.f32 %v61, %v62
    %137 = vadd.xlane.f32.xlu0 %v136
    %v138 = vpop.xlane.xlu0 %137
    %v139 = vadd.f32 %v63, %v64
    %140 = vadd.xlane.f32.xlu0 %v139
    %v141 = vpop.xlane.xlu0 %140
    %v142 = vadd.f32 %v65, %v66
    %143 = vadd.xlane.f32.xlu0 %v142
    %v144 = vpop.xlane.xlu0 %143
    %v145 = vadd.f32 %v67, %v68
    %146 = vadd.xlane.f32.xlu0 %v145
    %v147 = vpop.xlane.xlu0 %146
    %v148 = vadd.f32 %v69, %v70
    %149 = vadd.xlane.f32.xlu0 %v148
    %v150 = vpop.xlane.xlu0 %149
    %v151 = vadd.f32 %v71, %v72
    %152 = vadd.xlane.f32.xlu0 %v151
    %v153 = vpop.xlane.xlu0 %152
    %v154 = vadd.f32 %v73, %v74
    %155 = vadd.xlane.f32.xlu0 %v154
    %v156 = vpop.xlane.xlu0 %155
    %v157 = vadd.f32 %v75, %v76
    %158 = vadd.xlane.f32.xlu0 %v157
    %v159 = vpop.xlane.xlu0 %158
    %v160 = vadd.f32 %v77, %v78
    %161 = vadd.xlane.f32.xlu0 %v160
    %v162 = vpop.xlane.xlu0 %161
    %v163 = vadd.f32 %v79, %v80
    %164 = vadd.xlane.f32.xlu0 %v163
    %v165 = vpop.xlane.xlu0 %164
    %v166 = vadd.f32 %v81, %v82
    %167 = vadd.xlane.f32.xlu0 %v166
    %v168 = vpop.xlane.xlu0 %167
    %v169 = vadd.f32 %v83, %v84
    %170 = vadd.xlane.f32.xlu0 %v169
    %v171 = vpop.xlane.xlu0 %170
    %v172 = vadd.f32 %v85, %v86
    %173 = vadd.xlane.f32.xlu0 %v172
    %v174 = vpop.xlane.xlu0 %173
    %v175 = vadd.f32 %v87, %v88
    %176 = vadd.xlane.f32.xlu0 %v175
    %v177 = vpop.xlane.xlu0 %176
    %v178 = vadd.f32 %v89, %v90
    %179 = vadd.xlane.f32.xlu0 %v178
    %v180 = vpop.xlane.xlu0 %179
    %v181 = vadd.f32 %v91, %v92
    %182 = vadd.xlane.f32.xlu0 %v181
    %v183 = vpop.xlane.xlu0 %182
    %v184 = vadd.f32 %v93, %v94
    %185 = vadd.xlane.f32.xlu0 %v184
    %v186 = vpop.xlane.xlu0 %185
    %v187 = vadd.f32 %v95, %v96
    %188 = vadd.xlane.f32.xlu0 %v187
    %v189 = vpop.xlane.xlu0 %188
    %v190 = vadd.f32 %v97, %v98
    %191 = vadd.xlane.f32.xlu0 %v190
    %v192 = vpop.xlane.xlu0 %191
    %v193 = vadd.f32 %v99, %v100
    %194 = vadd.xlane.f32.xlu0 %v193
    %v195 = vpop.xlane.xlu0 %194
    %v196 = vadd.f32 %v101, %v102
    %197 = vadd.xlane.f32.xlu0 %v196
    %v198 = vpop.xlane.xlu0 %197
    %v199 = vmul.f32 %v105, 0.00390625
    %v200 = vmul.f32 %v108, 0.00390625
    %v201 = vmul.f32 %v111, 0.00390625
    %v202 = vmul.f32 %v114, 0.00390625
    %v203 = vmul.f32 %v117, 0.00390625
    %v204 = vmul.f32 %v120, 0.00390625
    %v205 = vmul.f32 %v123, 0.00390625
    %v206 = vmul.f32 %v126, 0.00390625
    %v207 = vmul.f32 %v129, 0.00390625
    %v208 = vmul.f32 %v132, 0.00390625
    %v209 = vmul.f32 %v135, 0.00390625
    %v210 = vmul.f32 %v138, 0.00390625
    %v211 = vmul.f32 %v141, 0.00390625
    %v212 = vmul.f32 %v144, 0.00390625
    %v213 = vmul.f32 %v147, 0.00390625
    %v214 = vmul.f32 %v150, 0.00390625
    %v215 = vmul.f32 %v153, 0.00390625
    %v216 = vmul.f32 %v156, 0.00390625
    %v217 = vmul.f32 %v159, 0.00390625
    %v218 = vmul.f32 %v162, 0.00390625
    %v219 = vmul.f32 %v165, 0.00390625
    %v220 = vmul.f32 %v168, 0.00390625
    %v221 = vmul.f32 %v171, 0.00390625
    %v222 = vmul.f32 %v174, 0.00390625
    %v223 = vmul.f32 %v177, 0.00390625
    %v224 = vmul.f32 %v180, 0.00390625
    %v225 = vmul.f32 %v183, 0.00390625
    %v226 = vmul.f32 %v186, 0.00390625
    %v227 = vmul.f32 %v189, 0.00390625
    %v228 = vmul.f32 %v192, 0.00390625
    %v229 = vmul.f32 %v195, 0.00390625
    %v230 = vmul.f32 %v198, 0.00390625
    %v231 = vld [vmem:[%s1] sm:$0xff]
    %v232 = vld [vmem:[%s1 + $0x8] sm:$0xff]
    %v233 = vld [vmem:[%s1 + $0x10] sm:$0xff]
    %v234 = vld [vmem:[%s1 + $0x18] sm:$0xff]
    %v235 = vld [vmem:[%s1 + $0x20] sm:$0xff]
    %v236 = vld [vmem:[%s1 + $0x28] sm:$0xff]
    %v237 = vld [vmem:[%s1 + $0x30] sm:$0xff]
    %v238 = vld [vmem:[%s1 + $0x38] sm:$0xff]
    %v239 = vld [vmem:[%s2] sm:$0x1]
    %v241 = vlaneseq
    %v242 = vshrl.u32 %v241, 7
    %v243 = vsub.s32 0, %v242
    %v244 = vrot.slane %v239, %v243
    %v278 = vlaneseq
    %v279 = vand.u32 %v278, 127
    %v280 = vlaneseq
    %v281 = vshrl.u32 %v280, 7
    %v282 = vsub.s32 %v279, %v281
    %v283 = vrot.slane %v199, %v282
    %v284 = vadd.s32 %v279, 4294967288
    %v285 = vlaneseq
    %v286 = vshrl.u32 %v285, 7
    %v287 = vsub.s32 %v284, %v286
    %v288 = vrot.slane %v200, %v287
    %vm289 = vcmask 130112
    %v290 = vsel %vm289, %v288, %v283
    %v291 = vadd.s32 %v279, 4294967280
    %v292 = vlaneseq
    %v293 = vshrl.u32 %v292, 7
    %v294 = vsub.s32 %v291, %v293
    %v295 = vrot.slane %v201, %v294
    %vm296 = vcmask 195712
    %v297 = vsel %vm296, %v295, %v290
    %v298 = vadd.s32 %v279, 4294967272
    %v299 = vlaneseq
    %v300 = vshrl.u32 %v299, 7
    %v301 = vsub.s32 %v298, %v300
    %v302 = vrot.slane %v202, %v301
    %vm303 = vcmask 261312
    %v304 = vsel %vm303, %v302, %v297
    %v305 = vadd.s32 %v279, 4294967264
    %v306 = vlaneseq
    %v307 = vshrl.u32 %v306, 7
    %v308 = vsub.s32 %v305, %v307
    %v309 = vrot.slane %v203, %v308
    %vm310 = vcmask 326912
    %v311 = vsel %vm310, %v309, %v304
    %v312 = vadd.s32 %v279, 4294967256
    %v313 = vlaneseq
    %v314 = vshrl.u32 %v313, 7
    %v315 = vsub.s32 %v312, %v314
    %v316 = vrot.slane %v204, %v315
    %vm317 = vcmask 392512
    %v318 = vsel %vm317, %v316, %v311
    %v319 = vadd.s32 %v279, 4294967248
    %v320 = vlaneseq
    %v321 = vshrl.u32 %v320, 7
    %v322 = vsub.s32 %v319, %v321
    %v323 = vrot.slane %v205, %v322
    %vm324 = vcmask 458112
    %v325 = vsel %vm324, %v323, %v318
    %v326 = vadd.s32 %v279, 4294967240
    %v327 = vlaneseq
    %v328 = vshrl.u32 %v327, 7
    %v329 = vsub.s32 %v326, %v328
    %v330 = vrot.slane %v206, %v329
    %vm331 = vcmask 523712
    %v332 = vsel %vm331, %v330, %v325
    %v333 = vlaneseq
    %v334 = vshrl.u32 %v333, 7
    %v335 = vsub.s32 %v279, %v334
    %v336 = vrot.slane %v207, %v335
    %v337 = vlaneseq
    %v338 = vshrl.u32 %v337, 7
    %v339 = vsub.s32 %v284, %v338
    %v340 = vrot.slane %v208, %v339
    %v341 = vsel %vm289, %v340, %v336
    %v342 = vlaneseq
    %v343 = vshrl.u32 %v342, 7
    %v344 = vsub.s32 %v291, %v343
    %v345 = vrot.slane %v209, %v344
    %v346 = vsel %vm296, %v345, %v341
    %v347 = vlaneseq
    %v348 = vshrl.u32 %v347, 7
    %v349 = vsub.s32 %v298, %v348
    %v350 = vrot.slane %v210, %v349
    %v351 = vsel %vm303, %v350, %v346
    %v352 = vlaneseq
    %v353 = vshrl.u32 %v352, 7
    %v354 = vsub.s32 %v305, %v353
    %v355 = vrot.slane %v211, %v354
    %v356 = vsel %vm310, %v355, %v351
    %v357 = vlaneseq
    %v358 = vshrl.u32 %v357, 7
    %v359 = vsub.s32 %v312, %v358
    %v360 = vrot.slane %v212, %v359
    %v361 = vsel %vm317, %v360, %v356
    %v362 = vlaneseq
    %v363 = vshrl.u32 %v362, 7
    %v364 = vsub.s32 %v319, %v363
    %v365 = vrot.slane %v213, %v364
    %v366 = vsel %vm324, %v365, %v361
    %v367 = vlaneseq
    %v368 = vshrl.u32 %v367, 7
    %v369 = vsub.s32 %v326, %v368
    %v370 = vrot.slane %v214, %v369
    %v371 = vsel %vm331, %v370, %v366
    %v372 = vlaneseq
    %v373 = vshrl.u32 %v372, 7
    %v374 = vsub.s32 %v279, %v373
    %v375 = vrot.slane %v215, %v374
    %v376 = vlaneseq
    %v377 = vshrl.u32 %v376, 7
    %v378 = vsub.s32 %v284, %v377
    %v379 = vrot.slane %v216, %v378
    %v380 = vsel %vm289, %v379, %v375
    %v381 = vlaneseq
    %v382 = vshrl.u32 %v381, 7
    %v383 = vsub.s32 %v291, %v382
    %v384 = vrot.slane %v217, %v383
    %v385 = vsel %vm296, %v384, %v380
    %v386 = vlaneseq
    %v387 = vshrl.u32 %v386, 7
    %v388 = vsub.s32 %v298, %v387
    %v389 = vrot.slane %v218, %v388
    %v390 = vsel %vm303, %v389, %v385
    %v391 = vlaneseq
    %v392 = vshrl.u32 %v391, 7
    %v393 = vsub.s32 %v305, %v392
    %v394 = vrot.slane %v219, %v393
    %v395 = vsel %vm310, %v394, %v390
    %v396 = vlaneseq
    %v397 = vshrl.u32 %v396, 7
    %v398 = vsub.s32 %v312, %v397
    %v399 = vrot.slane %v220, %v398
    %v400 = vsel %vm317, %v399, %v395
    %v401 = vlaneseq
    %v402 = vshrl.u32 %v401, 7
    %v403 = vsub.s32 %v319, %v402
    %v404 = vrot.slane %v221, %v403
    %v405 = vsel %vm324, %v404, %v400
    %v406 = vlaneseq
    %v407 = vshrl.u32 %v406, 7
    %v408 = vsub.s32 %v326, %v407
    %v409 = vrot.slane %v222, %v408
    %v410 = vsel %vm331, %v409, %v405
    %v411 = vlaneseq
    %v412 = vshrl.u32 %v411, 7
    %v413 = vsub.s32 %v279, %v412
    %v414 = vrot.slane %v223, %v413
    %v415 = vlaneseq
    %v416 = vshrl.u32 %v415, 7
    %v417 = vsub.s32 %v284, %v416
    %v418 = vrot.slane %v224, %v417
    %v419 = vsel %vm289, %v418, %v414
    %v420 = vlaneseq
    %v421 = vshrl.u32 %v420, 7
    %v422 = vsub.s32 %v291, %v421
    %v423 = vrot.slane %v225, %v422
    %v424 = vsel %vm296, %v423, %v419
    %v425 = vlaneseq
    %v426 = vshrl.u32 %v425, 7
    %v427 = vsub.s32 %v298, %v426
    %v428 = vrot.slane %v226, %v427
    %v429 = vsel %vm303, %v428, %v424
    %v430 = vlaneseq
    %v431 = vshrl.u32 %v430, 7
    %v432 = vsub.s32 %v305, %v431
    %v433 = vrot.slane %v227, %v432
    %v434 = vsel %vm310, %v433, %v429
    %v435 = vlaneseq
    %v436 = vshrl.u32 %v435, 7
    %v437 = vsub.s32 %v312, %v436
    %v438 = vrot.slane %v228, %v437
    %v439 = vsel %vm317, %v438, %v434
    %v440 = vlaneseq
    %v441 = vshrl.u32 %v440, 7
    %v442 = vsub.s32 %v319, %v441
    %v443 = vrot.slane %v229, %v442
    %v444 = vsel %vm324, %v443, %v439
    %v445 = vlaneseq
    %v446 = vshrl.u32 %v445, 7
    %v447 = vsub.s32 %v326, %v446
    %v448 = vrot.slane %v230, %v447
    %v449 = vsel %vm331, %v448, %v444
    %vm450 = vcmask 1041409
    %v451 = vsel %vm450, %v371, %v332
    %vm452 = vcmask 1042434
    %v453 = vsel %vm452, %v410, %v451
    %vm454 = vcmask 1043459
    %v455 = vsel %vm454, %v449, %v453
    %vm456 = vcmask 523264
    %v457 = vsel %vm456, %v455, 0
    %459 = vmatprep.subr.mxu0 0.0
    %460 = vmatpush1.msra.mxu0 %v231
    %461 = vmatprep.subr.mxu0 0.0
    %462 = vmatpush1.msra.mxu0 %v232
    %463 = vmatprep.subr.mxu0 0.0
    %464 = vmatpush1.msra.mxu0 %v233
    %465 = vmatprep.subr.mxu0 0.0
    %466 = vmatpush1.msra.mxu0 %v234
    %467 = vmatprep.subr.mxu0 0.0
    %468 = vmatpush1.msra.mxu0 %v235
    %469 = vmatprep.subr.mxu0 0.0
    %470 = vmatpush1.msra.mxu0 %v236
    %471 = vmatprep.subr.mxu0 0.0
    %472 = vmatpush1.msra.mxu0 %v237
    %473 = vmatprep.subr.mxu0 0.0
    %474 = vmatpush1.msra.mxu0 %v238
    %475 = vmatprep.subr.mxu0 0.0
    %476 = vmatpush1.msra.mxu0 0.0
    %477 = vmatprep.subr.mxu0 0.0
    %478 = vmatpush1.msra.mxu0 0.0
    %479 = vmatprep.subr.mxu0 0.0
    %480 = vmatpush1.msra.mxu0 0.0
    %481 = vmatprep.subr.mxu0 0.0
    %482 = vmatpush1.msra.mxu0 0.0
    %483 = vmatprep.subr.mxu0 0.0
    %484 = vmatpush1.msra.mxu0 0.0
    %485 = vmatprep.subr.mxu0 0.0
    %486 = vmatpush1.msra.mxu0 0.0
    %487 = vmatprep.subr.mxu0 0.0
    %488 = vmatpush1.msra.mxu0 0.0
    %489 = vmatprep.subr.mxu0 0.0
    %490 = vmatpush1.msra.mxu0 0.0
    %491 = vmatprep.subr.mxu0 0.0
    %492 = vmatpush1.msra.mxu0 0.0
    %493 = vmatprep.subr.mxu0 0.0
    %494 = vmatpush1.msra.mxu0 0.0
    %495 = vmatprep.subr.mxu0 0.0
    %496 = vmatpush1.msra.mxu0 0.0
    %497 = vmatprep.subr.mxu0 0.0
    %498 = vmatpush1.msra.mxu0 0.0
    %499 = vmatprep.subr.mxu0 0.0
    %500 = vmatpush1.msra.mxu0 0.0
    %501 = vmatprep.subr.mxu0 0.0
    %502 = vmatpush1.msra.mxu0 0.0
    %503 = vmatprep.subr.mxu0 0.0
    %504 = vmatpush1.msra.mxu0 0.0
    %505 = vmatprep.subr.mxu0 0.0
    %506 = vmatpush1.msra.mxu0 0.0
    %507 = vmatprep.subr.mxu0 0.0
    %508 = vmatpush1.msra.mxu0 0.0
    %509 = vmatprep.subr.mxu0 0.0
    %510 = vmatpush1.msra.mxu0 0.0
    %511 = vmatprep.subr.mxu0 0.0
    %512 = vmatpush1.msra.mxu0 0.0
    %513 = vmatprep.subr.mxu0 0.0
    %514 = vmatpush1.msra.mxu0 0.0
    %515 = vmatprep.subr.mxu0 0.0
    %516 = vmatpush1.msra.mxu0 0.0
    %517 = vmatprep.subr.mxu0 0.0
    %518 = vmatpush1.msra.mxu0 0.0
    %519 = vmatprep.subr.mxu0 0.0
    %520 = vmatpush1.msra.mxu0 0.0
    %521 = vmatprep.subr.mxu0 0.0
    %522 = vmatpush1.msra.mxu0 0.0
    %523 = vmatprep.mubr.f32.mxu0 0.0
    %524 = vmatmul.mubr.f32.gmra.mrb[0].mxu0 %v457
    %v525 = vpop.f32.mrb[0].mxu0
    %v526 = vadd.f32 %v244, %v525
    %v527 = vpop.f32.mrb[0].mxu0
    %528 = vdwg.mxu0
    %s529 = sld [smem:[#allocation2]]
    %vm530 = vcmp.ge.f32.partialorder %v526, 0.0
    %v531 = vstv %s529
    %v532 = vmul.f32 %v531, %v526
    %v533 = vsel %vm530, %v526, %v532
    %v534 = vld [vmem:[%s3] sm:$0xf]
    %v535 = vld [vmem:[%s4] sm:$0x1]
    %v537 = vlaneseq
    %v538 = vshrl.u32 %v537, 7
    %v539 = vsub.s32 0, %v538
    %v540 = vrot.slane %v535, %v539
    %vm542 = vcmask 31744
    %v544 = vsel %vm542, %v533, 0
    %vm546 = vcmask 1043456
    %v548 = vsel %vm546, %v534, 0
    %550 = vmatprep.subr.mxu0 0.0
    %551 = vmatpush1.msra.mxu0 %v548
    %552 = vmatprep.subr.mxu0 0.0
    %553 = vmatpush1.msra.mxu0 0.0
    %554 = vmatprep.subr.mxu0 0.0
    %555 = vmatpush1.msra.mxu0 0.0
    %556 = vmatprep.subr.mxu0 0.0
    %557 = vmatpush1.msra.mxu0 0.0
    %558 = vmatprep.subr.mxu0 0.0
    %559 = vmatpush1.msra.mxu0 0.0
    %560 = vmatprep.subr.mxu0 0.0
    %561 = vmatpush1.msra.mxu0 0.0
    %562 = vmatprep.subr.mxu0 0.0
    %563 = vmatpush1.msra.mxu0 0.0
    %564 = vmatprep.subr.mxu0 0.0
    %565 = vmatpush1.msra.mxu0 0.0
    %566 = vmatprep.subr.mxu0 0.0
    %567 = vmatpush1.msra.mxu0 0.0
    %568 = vmatprep.subr.mxu0 0.0
    %569 = vmatpush1.msra.mxu0 0.0
    %570 = vmatprep.subr.mxu0 0.0
    %571 = vmatpush1.msra.mxu0 0.0
    %572 = vmatprep.subr.mxu0 0.0
    %573 = vmatpush1.msra.mxu0 0.0
    %574 = vmatprep.subr.mxu0 0.0
    %575 = vmatpush1.msra.mxu0 0.0
    %576 = vmatprep.subr.mxu0 0.0
    %577 = vmatpush1.msra.mxu0 0.0
    %578 = vmatprep.subr.mxu0 0.0
    %579 = vmatpush1.msra.mxu0 0.0
    %580 = vmatprep.subr.mxu0 0.0
    %581 = vmatpush1.msra.mxu0 0.0
    %582 = vmatprep.subr.mxu0 0.0
    %583 = vmatpush1.msra.mxu0 0.0
    %584 = vmatprep.subr.mxu0 0.0
    %585 = vmatpush1.msra.mxu0 0.0
    %586 = vmatprep.subr.mxu0 0.0
    %587 = vmatpush1.msra.mxu0 0.0
    %588 = vmatprep.subr.mxu0 0.0
    %589 = vmatpush1.msra.mxu0 0.0
    %590 = vmatprep.subr.mxu0 0.0
    %591 = vmatpush1.msra.mxu0 0.0
    %592 = vmatprep.subr.mxu0 0.0
    %593 = vmatpush1.msra.mxu0 0.0
    %594 = vmatprep.subr.mxu0 0.0
    %595 = vmatpush1.msra.mxu0 0.0
    %596 = vmatprep.subr.mxu0 0.0
    %597 = vmatpush1.msra.mxu0 0.0
    %598 = vmatprep.subr.mxu0 0.0
    %599 = vmatpush1.msra.mxu0 0.0
    %600 = vmatprep.subr.mxu0 0.0
    %601 = vmatpush1.msra.mxu0 0.0
    %602 = vmatprep.subr.mxu0 0.0
    %603 = vmatpush1.msra.mxu0 0.0
    %604 = vmatprep.subr.mxu0 0.0
    %605 = vmatpush1.msra.mxu0 0.0
    %606 = vmatprep.subr.mxu0 0.0
    %607 = vmatpush1.msra.mxu0 0.0
    %608 = vmatprep.subr.mxu0 0.0
    %609 = vmatpush1.msra.mxu0 0.0
    %610 = vmatprep.subr.mxu0 0.0
    %611 = vmatpush1.msra.mxu0 0.0
    %612 = vmatprep.subr.mxu0 0.0
    %613 = vmatpush1.msra.mxu0 0.0
    %614 = vmatprep.mubr.f32.mxu0 0.0
    %615 = vmatmul.mubr.f32.gmra.mrb[0].mxu0 %v544
    %v616 = vpop.f32.mrb[0].mxu0
    %v617 = vadd.f32 %v540, %v616
    %v618 = vpop.f32.mrb[0].mxu0
    %619 = vdwg.mxu0
    %v620 = vxor.u32 %v617, 2147483648
    %v621 = vmul.f32 %v620, 1.442695
    %v622 = vpow.pop %v621
    %v623 = vadd.f32 %v622, 1.0
    %v624 = vrcp.pop %v623
    %v625 = vmul.f32 1.0, %v624
    %v626 = vlaneseq
    %v627 = vshrl.u32 %v626, 7
    %v628 = vsub.s32 0, %v627
    %v629 = vrot.slane %v625, %v628
    %631 = vbcast.lane.b32.xlu0 %v629, 256
    %v632 = vpop.permute.xlu0 %631
    %s634 = sor.u32 256, 8
    %635 = vbcast.lane.b32.xlu0 %v629, %s634
    %v636 = vpop.permute.xlu0 %635
    %s638 = sor.u32 256, 16
    %639 = vbcast.lane.b32.xlu0 %v629, %s638
    %v640 = vpop.permute.xlu0 %639
    %s642 = sor.u32 256, 24
    %643 = vbcast.lane.b32.xlu0 %v629, %s642
    %v644 = vpop.permute.xlu0 %643
    %s646 = sor.u32 256, 32
    %647 = vbcast.lane.b32.xlu0 %v629, %s646
    %v648 = vpop.permute.xlu0 %647
    %s650 = sor.u32 256, 40
    %651 = vbcast.lane.b32.xlu0 %v629, %s650
    %v652 = vpop.permute.xlu0 %651
    %s654 = sor.u32 256, 48
    %655 = vbcast.lane.b32.xlu0 %v629, %s654
    %v656 = vpop.permute.xlu0 %655
    %s658 = sor.u32 256, 56
    %659 = vbcast.lane.b32.xlu0 %v629, %s658
    %v660 = vpop.permute.xlu0 %659
    %v661 = vlaneseq
    %v662 = vshrl.u32 %v661, 7
    %v663 = vsub.s32 1, %v662
    %v664 = vrot.slane %v625, %v663
    %666 = vbcast.lane.b32.xlu0 %v664, 256
    %v667 = vpop.permute.xlu0 %666
    %s669 = sor.u32 256, 8
    %670 = vbcast.lane.b32.xlu0 %v664, %s669
    %v671 = vpop.permute.xlu0 %670
    %s673 = sor.u32 256, 16
    %674 = vbcast.lane.b32.xlu0 %v664, %s673
    %v675 = vpop.permute.xlu0 %674
    %s677 = sor.u32 256, 24
    %678 = vbcast.lane.b32.xlu0 %v664, %s677
    %v679 = vpop.permute.xlu0 %678
    %s681 = sor.u32 256, 32
    %682 = vbcast.lane.b32.xlu0 %v664, %s681
    %v683 = vpop.permute.xlu0 %682
    %s685 = sor.u32 256, 40
    %686 = vbcast.lane.b32.xlu0 %v664, %s685
    %v687 = vpop.permute.xlu0 %686
    %s689 = sor.u32 256, 48
    %690 = vbcast.lane.b32.xlu0 %v664, %s689
    %v691 = vpop.permute.xlu0 %690
    %s693 = sor.u32 256, 56
    %694 = vbcast.lane.b32.xlu0 %v664, %s693
    %v695 = vpop.permute.xlu0 %694
    %v696 = vlaneseq
    %v697 = vshrl.u32 %v696, 7
    %v698 = vsub.s32 2, %v697
    %v699 = vrot.slane %v625, %v698
    %701 = vbcast.lane.b32.xlu0 %v699, 256
    %v702 = vpop.permute.xlu0 %701
    %s704 = sor.u32 256, 8
    %705 = vbcast.lane.b32.xlu0 %v699, %s704
    %v706 = vpop.permute.xlu0 %705
    %s708 = sor.u32 256, 16
    %709 = vbcast.lane.b32.xlu0 %v699, %s708
    %v710 = vpop.permute.xlu0 %709
    %s712 = sor.u32 256, 24
    %713 = vbcast.lane.b32.xlu0 %v699, %s712
    %v714 = vpop.permute.xlu0 %713
    %s716 = sor.u32 256, 32
    %717 = vbcast.lane.b32.xlu0 %v699, %s716
    %v718 = vpop.permute.xlu0 %717
    %s720 = sor.u32 256, 40
    %721 = vbcast.lane.b32.xlu0 %v699, %s720
    %v722 = vpop.permute.xlu0 %721
    %s724 = sor.u32 256, 48
    %725 = vbcast.lane.b32.xlu0 %v699, %s724
    %v726 = vpop.permute.xlu0 %725
    %s728 = sor.u32 256, 56
    %729 = vbcast.lane.b32.xlu0 %v699, %s728
    %v730 = vpop.permute.xlu0 %729
    %v731 = vlaneseq
    %v732 = vshrl.u32 %v731, 7
    %v733 = vsub.s32 3, %v732
    %v734 = vrot.slane %v625, %v733
    %736 = vbcast.lane.b32.xlu0 %v734, 256
    %v737 = vpop.permute.xlu0 %736
    %s739 = sor.u32 256, 8
    %740 = vbcast.lane.b32.xlu0 %v734, %s739
    %v741 = vpop.permute.xlu0 %740
    %s743 = sor.u32 256, 16
    %744 = vbcast.lane.b32.xlu0 %v734, %s743
    %v745 = vpop.permute.xlu0 %744
    %s747 = sor.u32 256, 24
    %748 = vbcast.lane.b32.xlu0 %v734, %s747
    %v749 = vpop.permute.xlu0 %748
    %s751 = sor.u32 256, 32
    %752 = vbcast.lane.b32.xlu0 %v734, %s751
    %v753 = vpop.permute.xlu0 %752
    %s755 = sor.u32 256, 40
    %756 = vbcast.lane.b32.xlu0 %v734, %s755
    %v757 = vpop.permute.xlu0 %756
    %s759 = sor.u32 256, 48
    %760 = vbcast.lane.b32.xlu0 %v734, %s759
    %v761 = vpop.permute.xlu0 %760
    %s763 = sor.u32 256, 56
    %764 = vbcast.lane.b32.xlu0 %v734, %s763
    %v765 = vpop.permute.xlu0 %764
    %v766 = vmul.f32 %v39, %v632
    %v767 = vmul.f32 %v40, %v632
    %v768 = vmul.f32 %v41, %v636
    %v769 = vmul.f32 %v42, %v636
    %v770 = vmul.f32 %v43, %v640
    %v771 = vmul.f32 %v44, %v640
    %v772 = vmul.f32 %v45, %v644
    %v773 = vmul.f32 %v46, %v644
    %v774 = vmul.f32 %v47, %v648
    %v775 = vmul.f32 %v48, %v648
    %v776 = vmul.f32 %v49, %v652
    %v777 = vmul.f32 %v50, %v652
    %v778 = vmul.f32 %v51, %v656
    %v779 = vmul.f32 %v52, %v656
    %v780 = vmul.f32 %v53, %v660
    %v781 = vmul.f32 %v54, %v660
    %v782 = vmul.f32 %v55, %v667
    %v783 = vmul.f32 %v56, %v667
    %v784 = vmul.f32 %v57, %v671
    %v785 = vmul.f32 %v58, %v671
    %v786 = vmul.f32 %v59, %v675
    %v787 = vmul.f32 %v60, %v675
    %v788 = vmul.f32 %v61, %v679
    %v789 = vmul.f32 %v62, %v679
    %v790 = vmul.f32 %v63, %v683
    %v791 = vmul.f32 %v64, %v683
    %v792 = vmul.f32 %v65, %v687
    %v793 = vmul.f32 %v66, %v687
    %v794 = vmul.f32 %v67, %v691
    %v795 = vmul.f32 %v68, %v691
    %v796 = vmul.f32 %v69, %v695
    %v797 = vmul.f32 %v70, %v695
    %v798 = vmul.f32 %v71, %v702
    %v799 = vmul.f32 %v72, %v702
    %v800 = vmul.f32 %v73, %v706
    %v801 = vmul.f32 %v74, %v706
    %v802 = vmul.f32 %v75, %v710
    %v803 = vmul.f32 %v76, %v710
    %v804 = vmul.f32 %v77, %v714
    %v805 = vmul.f32 %v78, %v714
    %v806 = vmul.f32 %v79, %v718
    %v807 = vmul.f32 %v80, %v718
    %v808 = vmul.f32 %v81, %v722
    %v809 = vmul.f32 %v82, %v722
    %v810 = vmul.f32 %v83, %v726
    %v811 = vmul.f32 %v84, %v726
    %v812 = vmul.f32 %v85, %v730
    %v813 = vmul.f32 %v86, %v730
    %v814 = vmul.f32 %v87, %v737
    %v815 = vmul.f32 %v88, %v737
    %v816 = vmul.f32 %v89, %v741
    %v817 = vmul.f32 %v90, %v741
    %v818 = vmul.f32 %v91, %v745
    %v819 = vmul.f32 %v92, %v745
    %v820 = vmul.f32 %v93, %v749
    %v821 = vmul.f32 %v94, %v749
    %v822 = vmul.f32 %v95, %v753
    %v823 = vmul.f32 %v96, %v753
    %v824 = vmul.f32 %v97, %v757
    %v825 = vmul.f32 %v98, %v757
    %v826 = vmul.f32 %v99, %v761
    %v827 = vmul.f32 %v100, %v761
    %v828 = vmul.f32 %v101, %v765
    %v829 = vmul.f32 %v102, %v765
    %830 = vst [vmem:[#allocation6] sm:$0xff] %v766
    %831 = vst [vmem:[#allocation6 + $0x8] sm:$0xff] %v767
    %832 = vst [vmem:[#allocation6 + $0x10] sm:$0xff] %v768
    %833 = vst [vmem:[#allocation6 + $0x18] sm:$0xff] %v769
    %834 = vst [vmem:[#allocation6 + $0x20] sm:$0xff] %v770
    %835 = vst [vmem:[#allocation6 + $0x28] sm:$0xff] %v771
    %836 = vst [vmem:[#allocation6 + $0x30] sm:$0xff] %v772
    %837 = vst [vmem:[#allocation6 + $0x38] sm:$0xff] %v773
    %838 = vst [vmem:[#allocation6 + $0x40] sm:$0xff] %v774
    %839 = vst [vmem:[#allocation6 + $0x48] sm:$0xff] %v775
    %840 = vst [vmem:[#allocation6 + $0x50] sm:$0xff] %v776
    %841 = vst [vmem:[#allocation6 + $0x58] sm:$0xff] %v777
    %842 = vst [vmem:[#allocation6 + $0x60] sm:$0xff] %v778
    %843 = vst [vmem:[#allocation6 + $0x68] sm:$0xff] %v779
    %844 = vst [vmem:[#allocation6 + $0x70] sm:$0xff] %v780
    %845 = vst [vmem:[#allocation6 + $0x78] sm:$0xff] %v781
    %846 = vst [vmem:[#allocation6 + $0x80] sm:$0xff] %v782
    %847 = vst [vmem:[#allocation6 + $0x88] sm:$0xff] %v783
    %848 = vst [vmem:[#allocation6 + $0x90] sm:$0xff] %v784
    %849 = vst [vmem:[#allocation6 + $0x98] sm:$0xff] %v785
    %850 = vst [vmem:[#allocation6 + $0xa0] sm:$0xff] %v786
    %851 = vst [vmem:[#allocation6 + $0xa8] sm:$0xff] %v787
    %852 = vst [vmem:[#allocation6 + $0xb0] sm:$0xff] %v788
    %853 = vst [vmem:[#allocation6 + $0xb8] sm:$0xff] %v789
    %854 = vst [vmem:[#allocation6 + $0xc0] sm:$0xff] %v790
    %855 = vst [vmem:[#allocation6 + $0xc8] sm:$0xff] %v791
    %856 = vst [vmem:[#allocation6 + $0xd0] sm:$0xff] %v792
    %857 = vst [vmem:[#allocation6 + $0xd8] sm:$0xff] %v793
    %858 = vst [vmem:[#allocation6 + $0xe0] sm:$0xff] %v794
    %859 = vst [vmem:[#allocation6 + $0xe8] sm:$0xff] %v795
    %860 = vst [vmem:[#allocation6 + $0xf0] sm:$0xff] %v796
    %861 = vst [vmem:[#allocation6 + $0xf8] sm:$0xff] %v797
    %862 = vst [vmem:[#allocation6 + $0x100] sm:$0xff] %v798
    %863 = vst [vmem:[#allocation6 + $0x108] sm:$0xff] %v799
    %864 = vst [vmem:[#allocation6 + $0x110] sm:$0xff] %v800
    %865 = vst [vmem:[#allocation6 + $0x118] sm:$0xff] %v801
    %866 = vst [vmem:[#allocation6 + $0x120] sm:$0xff] %v802
    %867 = vst [vmem:[#allocation6 + $0x128] sm:$0xff] %v803
    %868 = vst [vmem:[#allocation6 + $0x130] sm:$0xff] %v804
    %869 = vst [vmem:[#allocation6 + $0x138] sm:$0xff] %v805
    %870 = vst [vmem:[#allocation6 + $0x140] sm:$0xff] %v806
    %871 = vst [vmem:[#allocation6 + $0x148] sm:$0xff] %v807
    %872 = vst [vmem:[#allocation6 + $0x150] sm:$0xff] %v808
    %873 = vst [vmem:[#allocation6 + $0x158] sm:$0xff] %v809
    %874 = vst [vmem:[#allocation6 + $0x160] sm:$0xff] %v810
    %875 = vst [vmem:[#allocation6 + $0x168] sm:$0xff] %v811
    %876 = vst [vmem:[#allocation6 + $0x170] sm:$0xff] %v812
    %877 = vst [vmem:[#allocation6 + $0x178] sm:$0xff] %v813
    %878 = vst [vmem:[#allocation6 + $0x180] sm:$0xff] %v814
    %879 = vst [vmem:[#allocation6 + $0x188] sm:$0xff] %v815
    %880 = vst [vmem:[#allocation6 + $0x190] sm:$0xff] %v816
    %881 = vst [vmem:[#allocation6 + $0x198] sm:$0xff] %v817
    %882 = vst [vmem:[#allocation6 + $0x1a0] sm:$0xff] %v818
    %883 = vst [vmem:[#allocation6 + $0x1a8] sm:$0xff] %v819
    %884 = vst [vmem:[#allocation6 + $0x1b0] sm:$0xff] %v820
    %885 = vst [vmem:[#allocation6 + $0x1b8] sm:$0xff] %v821
    %886 = vst [vmem:[#allocation6 + $0x1c0] sm:$0xff] %v822
    %887 = vst [vmem:[#allocation6 + $0x1c8] sm:$0xff] %v823
    %888 = vst [vmem:[#allocation6 + $0x1d0] sm:$0xff] %v824
    %889 = vst [vmem:[#allocation6 + $0x1d8] sm:$0xff] %v825
    %890 = vst [vmem:[#allocation6 + $0x1e0] sm:$0xff] %v826
    %891 = vst [vmem:[#allocation6 + $0x1e8] sm:$0xff] %v827
    %892 = vst [vmem:[#allocation6 + $0x1f0] sm:$0xff] %v828
    %893 = vst [vmem:[#allocation6 + $0x1f8] sm:$0xff] %v829
    // Predicated region
    $region30: #{tpu_custom_call.1} parent=1 // pred_check
      _
    $region31: #{tpu_custom_call.1} parent=1 // pred_check_branch
      %895 = sbr.rel (0) target = $region33
    $region32: #{tpu_custom_call.1} parent=1 // pred_region
      %s897 = ssub.s32 8192, 8192
      %898 = vsyncadd [#allocation5], %s897
      %s899 = sshll.u32 [#allocation6], 4
      %s900 = int_to_ptr.vmem [resolvable:$true] %s899
      %905 = dma.vmem_to_hbm [thread:$0]  %s900, 8192, %s6, [#allocation5], 256, 256, 16
    $region33: #{tpu_custom_call.1} parent=1 // pred_fallthru
      _
    // Predicated region
    $region34: #{tpu_custom_call.1} parent=1 // pred_check
      _
    $region35: #{tpu_custom_call.1} parent=1 // pred_check_branch
      %907 = sbr.rel (0) target = $region37
    $region36: #{tpu_custom_call.1} parent=1 // pred_region
      %908 = dma.done [#allocation5], 8192
    $region37: #{tpu_custom_call.1} parent=1 // pred_fallthru
      _
    %909 = vsyncpa [#allocation4], 1
    %910 = vsyncpa [#allocation5], 1

</llo_original>
